<compile_context>
chip_gen: v6e
topology: v6e:2x2x1
jax: 0.10.0
libtpu: 0.0.40
codegen_flags: <defaults>
</compile_context>

<pallas_src>
import functools

import jax
import jax.numpy as jnp
from jax.experimental import pallas as pl
from jax.experimental.pallas import tpu as pltpu


def _round_up(a: int, m: int) -> int:
    return ((a + m - 1) // m) * m


def policy_kernel(xT_ref, w1_ref, b1_ref, w2_ref, b2_ref, oT_ref):
    # Feature-major orientation (batch on the lane axis):
    #   xT_ref : (n_state,  tb)        lane-dense input tile
    #   w1_ref : (n_hidden, n_state)   PyTorch nn.Linear layout, used as-is
    #   b1_ref : (n_hidden, 1)
    #   w2_ref : (n_action, n_hidden)
    #   b2_ref : (n_action, 1)
    #   oT_ref : (n_action, tb)        lane-dense output tile (unmasked stores)

    # fc1 + ReLU: f32 accumulate on the MXU, f32 epilogue on the VPU.
    h = jnp.dot(w1_ref[...], xT_ref[...], preferred_element_type=jnp.float32)
    h = jnp.maximum(h + b1_ref[...], 0.0)

    # fc2: hidden activation stays in VMEM/vregs, never written to HBM.
    logits = jnp.dot(w2_ref[...], h.astype(w2_ref.dtype),
                     preferred_element_type=jnp.float32)
    logits = logits + b2_ref[...]

    # Numerically stable softmax along the action axis (= axis 0 here,
    # equivalent to dim=1 in the PyTorch (batch, action) layout).
    m = jnp.max(logits, axis=0, keepdims=True)
    e = jnp.exp(logits - m)
    denom = jnp.sum(e, axis=0, keepdims=True)
    # EUP approximate reciprocal + one Newton refinement step.
    r = pl.reciprocal(denom, approx=True)
    r = r * (2.0 - denom * r)
    oT_ref[...] = (e * r).astype(oT_ref.dtype)


def _choose_tile_b(B, n_state, n_hidden, n_action, *, target_steps=8, cap=2048):
    """Lane-dim batch tile: multiple of 128, aims for >= target_steps grid
    steps (v7x megacore + pipelining), capped by a ~24 MiB VMEM budget."""
    tb = _round_up(max(1, -(-B // target_steps)), 128)
    tb = max(128, min(cap, tb))
    # Per-lane bytes: double-buffered x & out tiles + hidden activation (f32).
    bytes_per_col = 4 * (2 * _round_up(n_state, 8)
                         + 2 * _round_up(n_action, 8)
                         + _round_up(n_hidden, 8))
    budget = 24 * 1024 * 1024
    max_tb_budget = max(128, (budget // bytes_per_col) // 128 * 128)
    return min(tb, max_tb_budget)


@functools.partial(
    jax.jit, static_argnames=("tile_b", "param_dtype", "vmem_limit_bytes"))
def policy_forward(x, w1, b1, w2, b2, *, tile_b=None, param_dtype=None,
                   vmem_limit_bytes=None):
    """PolicyNet forward.

    x  : [B, n_state] f32
    w1 : [n_hidden, n_state] (PyTorch nn.Linear layout), b1: [n_hidden]
    w2 : [n_action, n_hidden],                           b2: [n_action]
    returns softmax probabilities [B, n_action] in f32.
    """
    B, n_state = x.shape
    n_hidden = w1.shape[0]
    n_action = w2.shape[0]

    # Feature-major presentation: no weight transposes needed; x transposed once
    # so the kernel loads a lane-dense (n_state, B) slab.
    xT = x.T
    b1_2d = b1.reshape(n_hidden, 1).astype(jnp.float32)
    b2_2d = b2.reshape(n_action, 1).astype(jnp.float32)

    if param_dtype is not None:   # e.g. jnp.bfloat16 on v5e/v6e (f32 accumulate kept)
        xT = xT.astype(param_dtype)
        w1 = w1.astype(param_dtype)
        w2 = w2.astype(param_dtype)

    tb = tile_b if tile_b is not None else _choose_tile_b(
        B, n_state, n_hidden, n_action)
    tb = max(128, _round_up(tb, 128))
    Bp = _round_up(B, tb)
    if Bp != B:
        # Zero-pad the lane/batch axis (fuses with the transpose copy above);
        # padded columns stay finite through softmax and are sliced off below.
        xT = jnp.pad(xT, ((0, 0), (0, Bp - B)))
    grid = (Bp // tb,)

    compiler_params = pltpu.CompilerParams(
        dimension_semantics=("parallel",),   # independent batch tiles (megacore)
        vmem_limit_bytes=vmem_limit_bytes,
    )

    oT = pl.pallas_call(
        policy_kernel,
        out_shape=jax.ShapeDtypeStruct((n_action, Bp), jnp.float32),
        grid_spec=pltpu.PrefetchScalarGridSpec(
            num_scalar_prefetch=0,
            grid=grid,
            in_specs=[
                pl.BlockSpec((n_state, tb), lambda i: (0, i)),         # x (lane-dense)
                pl.BlockSpec((n_hidden, n_state), lambda i: (0, 0)),   # W1 (resident)
                pl.BlockSpec((n_hidden, 1), lambda i: (0, 0)),         # b1 (resident)
                pl.BlockSpec((n_action, n_hidden), lambda i: (0, 0)),  # W2 (resident)
                pl.BlockSpec((n_action, 1), lambda i: (0, 0)),         # b2 (resident)
            ],
            out_specs=pl.BlockSpec((n_action, tb), lambda i: (0, i)),  # lane-dense out
        ),
        compiler_params=compiler_params,
    )(xT, w1, b1_2d, w2, b2_2d)

    return oT[:, :B].T


def _ref_forward(x, w1, b1, w2, b2):
    # Pure-JAX reference matching PyTorch semantics.
    h = jnp.maximum(x @ w1.T + b1, 0.0)
    logits = h @ w2.T + b2
    return jax.nn.softmax(logits, axis=1)


if __name__ == "__main__":
    n_state, n_hidden, n_action = 8, 32, 4
    batch = 16

    key = jax.random.PRNGKey(0)
    kx, kw1, kb1, kw2, kb2 = jax.random.split(key, 5)

    # Deterministic synthetic parameters in PyTorch nn.Linear layouts.
    x = jax.random.normal(kx, (batch, n_state), dtype=jnp.float32)
    w1 = jax.random.normal(kw1, (n_hidden, n_state), dtype=jnp.float32) * 0.1
    b1 = jax.random.normal(kb1, (n_hidden,), dtype=jnp.float32) * 0.1
    w2 = jax.random.normal(kw2, (n_action, n_hidden), dtype=jnp.float32) * 0.1
    b2 = jax.random.normal(kb2, (n_action,), dtype=jnp.float32) * 0.1

    out = policy_forward(x, w1, b1, w2, b2)
    out = jax.block_until_ready(out)

    ref = _ref_forward(x, w1, b1, w2, b2)
    assert out.shape == (batch, n_action)
    assert jnp.allclose(out, ref, atol=1e-5, rtol=1e-5), "mismatch vs reference"
    assert jnp.allclose(jnp.sum(out, axis=1), 1.0, atol=1e-5), "rows must sum to 1"

    print("KERNEL_OK")
</pallas_src>

<mosaic_0001>
module attributes {stable_mosaic.version = 11 : i64} {
  func.func @policy_kernel(%arg0: i32, %arg1: memref<8x128xf32, #tpu.memory_space<vmem>>, %arg2: memref<32x8xf32, #tpu.memory_space<vmem>>, %arg3: memref<32x1xf32, #tpu.memory_space<vmem>>, %arg4: memref<4x32xf32, #tpu.memory_space<vmem>>, %arg5: memref<4x1xf32, #tpu.memory_space<vmem>>, %arg6: memref<4x128xf32, #tpu.memory_space<vmem>>) attributes {dimension_semantics = [#tpu.dimension_semantics<parallel>], iteration_bounds = array<i64: 1>, scalar_prefetch = 0 : i64, scratch_operands = 0 : i64, tpu.core_type = #tpu.core_type<tc>, window_params = [{transform_indices = @transform_0, window_bounds = array<i64: 8, 128>}, {pipeline_mode = #tpu.pipeline_mode<synchronous>, transform_indices = @transform_1, window_bounds = array<i64: 32, 8>}, {pipeline_mode = #tpu.pipeline_mode<synchronous>, transform_indices = @transform_2, window_bounds = array<i64: 32, 1>}, {pipeline_mode = #tpu.pipeline_mode<synchronous>, transform_indices = @transform_3, window_bounds = array<i64: 4, 32>}, {pipeline_mode = #tpu.pipeline_mode<synchronous>, transform_indices = @transform_4, window_bounds = array<i64: 4, 1>}, {transform_indices = @transform_5, window_bounds = array<i64: 4, 128>}]} {
    %c0 = arith.constant 0 : index
    %c0_0 = arith.constant 0 : index
    %0 = vector.load %arg2[%c0, %c0_0] : memref<32x8xf32, #tpu.memory_space<vmem>>, vector<32x8xf32>
    %c0_1 = arith.constant 0 : index
    %c0_2 = arith.constant 0 : index
    %1 = vector.load %arg1[%c0_1, %c0_2] : memref<8x128xf32, #tpu.memory_space<vmem>>, vector<8x128xf32>
    %cst = arith.constant dense<0.000000e+00> : vector<32x128xf32>
    %2 = tpu.matmul %0, %1, %cst {dimension_numbers = #tpu.dot_dimension_numbers<[1], [0], [0], [1], [0, 0, 1, 1], [], []>} : vector<32x8xf32>, vector<8x128xf32>, vector<32x128xf32> -> vector<32x128xf32>
    %c0_3 = arith.constant 0 : index
    %c0_4 = arith.constant 0 : index
    %3 = vector.load %arg3[%c0_3, %c0_4] : memref<32x1xf32, #tpu.memory_space<vmem>>, vector<32x1xf32>
    %4 = vector.broadcast %3 : vector<32x1xf32> to vector<32x128xf32>
    %5 = arith.addf %2, %4 : vector<32x128xf32>
    %cst_5 = arith.constant 0.000000e+00 : f32
    %6 = vector.broadcast %cst_5 : f32 to vector<32x128xf32>
    %7 = arith.maximumf %5, %6 : vector<32x128xf32>
    %c0_6 = arith.constant 0 : index
    %c0_7 = arith.constant 0 : index
    %8 = vector.load %arg4[%c0_6, %c0_7] : memref<4x32xf32, #tpu.memory_space<vmem>>, vector<4x32xf32>
    %cst_8 = arith.constant dense<0.000000e+00> : vector<4x128xf32>
    %9 = tpu.matmul %8, %7, %cst_8 {dimension_numbers = #tpu.dot_dimension_numbers<[1], [0], [0], [1], [0, 0, 1, 1], [], []>} : vector<4x32xf32>, vector<32x128xf32>, vector<4x128xf32> -> vector<4x128xf32>
    %c0_9 = arith.constant 0 : index
    %c0_10 = arith.constant 0 : index
    %10 = vector.load %arg5[%c0_9, %c0_10] : memref<4x1xf32, #tpu.memory_space<vmem>>, vector<4x1xf32>
    %11 = vector.broadcast %10 : vector<4x1xf32> to vector<4x128xf32>
    %12 = arith.addf %9, %11 : vector<4x128xf32>
    %cst_11 = arith.constant dense<0xFF800000> : vector<128xf32>
    %13 = vector.multi_reduction <maximumf>, %12, %cst_11 [0] : vector<4x128xf32> to vector<128xf32>
    %14 = vector.shape_cast %13 : vector<128xf32> to vector<1x128xf32>
    %15 = vector.broadcast %14 : vector<1x128xf32> to vector<4x128xf32>
    %16 = arith.subf %12, %15 : vector<4x128xf32>
    %17 = math.exp %16 : vector<4x128xf32>
    %cst_12 = arith.constant dense<0.000000e+00> : vector<128xf32>
    %18 = vector.multi_reduction <add>, %17, %cst_12 [0] : vector<4x128xf32> to vector<128xf32>
    %19 = vector.shape_cast %18 : vector<128xf32> to vector<1x128xf32>
    %20 = tpu.reciprocal %19 {approx = true} : vector<1x128xf32> -> vector<1x128xf32>
    %21 = arith.mulf %19, %20 : vector<1x128xf32>
    %cst_13 = arith.constant 2.000000e+00 : f32
    %22 = vector.broadcast %cst_13 : f32 to vector<1x128xf32>
    %23 = arith.subf %22, %21 : vector<1x128xf32>
    %24 = arith.mulf %20, %23 : vector<1x128xf32>
    %25 = vector.broadcast %24 : vector<1x128xf32> to vector<4x128xf32>
    %26 = arith.mulf %17, %25 : vector<4x128xf32>
    %c0_14 = arith.constant 0 : index
    %c0_15 = arith.constant 0 : index
    %27 = vector.load %arg6[%c0_14, %c0_15] : memref<4x128xf32, #tpu.memory_space<vmem>>, vector<4x128xf32>
    tpu.vector_store %arg6[%c0_14, %c0_15], %26 {strides = array<i32>} : memref<4x128xf32, #tpu.memory_space<vmem>>, vector<4x128xf32>,
    return
  }
  func.func @transform_0(%arg0: i32) -> (i32, i32) {
    %c0_i32 = arith.constant 0 : i32
    %c0_i32_0 = arith.constant 0 : i32
    return %c0_i32, %arg0 : i32, i32
  }
  func.func @transform_1(%arg0: i32) -> (i32, i32) {
    %c0_i32 = arith.constant 0 : i32
    %c0_i32_0 = arith.constant 0 : i32
    %c0_i32_1 = arith.constant 0 : i32
    return %c0_i32, %c0_i32_0 : i32, i32
  }
  func.func @transform_2(%arg0: i32) -> (i32, i32) {
    %c0_i32 = arith.constant 0 : i32
    %c0_i32_0 = arith.constant 0 : i32
    %c0_i32_1 = arith.constant 0 : i32
    return %c0_i32, %c0_i32_0 : i32, i32
  }
  func.func @transform_3(%arg0: i32) -> (i32, i32) {
    %c0_i32 = arith.constant 0 : i32
    %c0_i32_0 = arith.constant 0 : i32
    %c0_i32_1 = arith.constant 0 : i32
    return %c0_i32, %c0_i32_0 : i32, i32
  }
  func.func @transform_4(%arg0: i32) -> (i32, i32) {
    %c0_i32 = arith.constant 0 : i32
    %c0_i32_0 = arith.constant 0 : i32
    %c0_i32_1 = arith.constant 0 : i32
    return %c0_i32, %c0_i32_0 : i32, i32
  }
  func.func @transform_5(%arg0: i32) -> (i32, i32) {
    %c0_i32 = arith.constant 0 : i32
    %c0_i32_0 = arith.constant 0 : i32
    return %c0_i32, %arg0 : i32, i32
  }
}

</mosaic_0001>

<llo_original>
// kernel: policy_forward.1
$region0: #{policy_forward.1}
  #allocation0 [shape = 'u32[]', space=smem, size = 0x4, offset = 0x4, fixed_abs, tag = 'smem constant byte address 0x4 - core index']
  #allocation1 [shape = 'u32[144,128]{1,0:T(1,128)}', space=vmem, size = 0x12000, scoped, tag = 'internal scratch']
  %s0 = inlined_call_operand.vmem [shape: f32[8,128], index: 0, kind: input, shape index: {}]
  %s1 = inlined_call_operand.vmem [shape: f32[32,8], index: 1, kind: input, shape index: {}]
  %s2 = inlined_call_operand.vmem [shape: f32[32,1], index: 2, kind: input, shape index: {}]
  %s3 = inlined_call_operand.vmem [shape: f32[4,32], index: 3, kind: input, shape index: {}]
  %s4 = inlined_call_operand.vmem [shape: f32[4,1], index: 4, kind: input, shape index: {}]
  %s5 = inlined_call_operand.vmem [shape: f32[4,128], index: 5, kind: output, shape index: {}]
  %s6 = sld [smem:[#allocation0]]
  $region30: #{policy_forward.1} parent=0
    _
  %s8 = ssub.s32 1, %s6
  %s9 = scalar_select 0, %s8, %s6
  // Predicated region
  $region2: #{policy_forward.1} parent=0 // pred_check
    _
  $region3: #{policy_forward.1} parent=0 // pred_check_branch
    %11 = sbr.rel (0) target = $region5
  $region4: #{policy_forward.1} parent=0 // pred_region
    _
  $region5: #{policy_forward.1} parent=0 // pred_fallthru
    _
  // Predicated region
  $region6: #{policy_forward.1} parent=0 // pred_check
    _
  $region7: #{policy_forward.1} parent=0 // pred_check_branch
    %13 = sbr.rel (0) target = $region9
  $region8: #{policy_forward.1} parent=0 // pred_region
    _
  $region9: #{policy_forward.1} parent=0 // pred_fallthru
    _
  // Predicated region
  $region10: #{policy_forward.1} parent=0 // pred_check
    _
  $region11: #{policy_forward.1} parent=0 // pred_check_branch
    %15 = sbr.rel (0) target = $region13
  $region12: #{policy_forward.1} parent=0 // pred_region
    _
  $region13: #{policy_forward.1} parent=0 // pred_fallthru
    _
  // Predicated region
  $region14: #{policy_forward.1} parent=0 // pred_check
    _
  $region15: #{policy_forward.1} parent=0 // pred_check_branch
    %17 = sbr.rel (0) target = $region17
  $region16: #{policy_forward.1} parent=0 // pred_region
    _
  $region17: #{policy_forward.1} parent=0 // pred_fallthru
    _
  // Predicated region
  $region18: #{policy_forward.1} parent=0 // pred_check
    _
  $region19: #{policy_forward.1} parent=0 // pred_check_branch
    %19 = sbr.rel (0) target = $region21
  $region20: #{policy_forward.1} parent=0 // pred_region
    _
  $region21: #{policy_forward.1} parent=0 // pred_fallthru
    _
  %v20 = vld [vmem:[%s1] sm:$0xff]
  %v21 = vld [vmem:[%s1 + $0x8] sm:$0xff]
  %v22 = vld [vmem:[%s1 + $0x10] sm:$0xff]
  %v23 = vld [vmem:[%s1 + $0x18] sm:$0xff]
  %v24 = vld [vmem:[%s0] sm:$0xff]
  %v25 = vld [vmem:[%s2] sm:$0xff]
  %v26 = vld [vmem:[%s2 + $0x8] sm:$0xff]
  %v27 = vld [vmem:[%s2 + $0x10] sm:$0xff]
  %v28 = vld [vmem:[%s2 + $0x18] sm:$0xff]
  %30 = vset.pattern.permute.xlu0 0
  %31 = vperm.xlu0 %30, %v25
  %v32 = vpop.permute.xlu0 %31
  %35 = vset.pattern.permute.xlu0 0
  %36 = vperm.xlu0 %35, %v26
  %v37 = vpop.permute.xlu0 %36
  %40 = vset.pattern.permute.xlu0 0
  %41 = vperm.xlu0 %40, %v27
  %v42 = vpop.permute.xlu0 %41
  %45 = vset.pattern.permute.xlu0 0
  %46 = vperm.xlu0 %45, %v28
  %v47 = vpop.permute.xlu0 %46
  %vm49 = vcmask 64512
  %v51 = vsel %vm49, %v20, 0
  %v54 = vsel %vm49, %v21, 0
  %v57 = vsel %vm49, %v22, 0
  %v60 = vsel %vm49, %v23, 0
  %62 = vmatprep.subr.mxu0 0.0
  %63 = vmatpush1.msra.mxu0 0.0
  %64 = vmatprep.subr.mxu0 0.0
  %65 = vmatpush1.msra.mxu0 0.0
  %66 = vmatprep.subr.mxu0 0.0
  %67 = vmatpush1.msra.mxu0 0.0
  %68 = vmatprep.subr.mxu0 0.0
  %69 = vmatpush1.msra.mxu0 0.0
  %70 = vmatprep.subr.mxu0 0.0
  %71 = vmatpush1.msra.mxu0 0.0
  %72 = vmatprep.subr.mxu0 0.0
  %73 = vmatpush1.msra.mxu0 0.0
  %74 = vmatprep.subr.mxu0 0.0
  %75 = vmatpush1.msra.mxu0 0.0
  %76 = vmatprep.subr.mxu0 0.0
  %77 = vmatpush1.msra.mxu0 0.0
  %78 = vmatprep.subr.mxu0 0.0
  %79 = vmatpush1.msra.mxu0 0.0
  %80 = vmatprep.subr.mxu0 0.0
  %81 = vmatpush1.msra.mxu0 0.0
  %82 = vmatprep.subr.mxu0 0.0
  %83 = vmatpush1.msra.mxu0 0.0
  %84 = vmatprep.subr.mxu0 0.0
  %85 = vmatpush1.msra.mxu0 0.0
  %86 = vmatprep.subr.mxu0 0.0
  %87 = vmatpush1.msra.mxu0 0.0
  %88 = vmatprep.subr.mxu0 0.0
  %89 = vmatpush1.msra.mxu0 0.0
  %90 = vmatprep.subr.mxu0 0.0
  %91 = vmatpush1.msra.mxu0 0.0
  %92 = vmatprep.subr.mxu0 0.0
  %93 = vmatpush1.msra.mxu0 %v24
  %94 = vmatprep.subr.mxu0 0.0
  %95 = vmatpush2.msra.mxu0 0.0
  %96 = vmatprep.subr.mxu0 0.0
  %97 = vmatpush2.msra.mxu0 0.0
  %98 = vmatprep.subr.mxu0 0.0
  %99 = vmatpush2.msra.mxu0 0.0
  %100 = vmatprep.subr.mxu0 0.0
  %101 = vmatpush2.msra.mxu0 0.0
  %102 = vmatprep.subr.mxu0 0.0
  %103 = vmatpush2.msra.mxu0 0.0
  %104 = vmatprep.subr.mxu0 0.0
  %105 = vmatpush2.msra.mxu0 0.0
  %106 = vmatprep.subr.mxu0 0.0
  %107 = vmatpush2.msra.mxu0 0.0
  %108 = vmatprep.subr.mxu0 0.0
  %109 = vmatpush2.msra.mxu0 0.0
  %110 = vmatprep.subr.mxu0 0.0
  %111 = vmatpush2.msra.mxu0 0.0
  %112 = vmatprep.subr.mxu0 0.0
  %113 = vmatpush2.msra.mxu0 0.0
  %114 = vmatprep.subr.mxu0 0.0
  %115 = vmatpush2.msra.mxu0 0.0
  %116 = vmatprep.subr.mxu0 0.0
  %117 = vmatpush2.msra.mxu0 0.0
  %118 = vmatprep.subr.mxu0 0.0
  %119 = vmatpush2.msra.mxu0 0.0
  %120 = vmatprep.subr.mxu0 0.0
  %121 = vmatpush2.msra.mxu0 0.0
  %122 = vmatprep.subr.mxu0 0.0
  %123 = vmatpush2.msra.mxu0 0.0
  %124 = vmatprep.subr.mxu0 0.0
  %125 = vmatpush2.msra.mxu0 0.0
  %126 = vmatprep.mubr.f32.mxu0 0.0
  %127 = vmatmul.mubr.f32.gmra.mxu0 %v51
  %v128 = vpop.f32.mrf.mxu0
  %v129 = vadd.f32 %v32, %v128
  %v130 = vpop.f32.mrf.mxu0
  %131 = vmatprep.mubr.f32.mxu0 0.0
  %132 = vmatmul.mubr.f32.gmra.mxu0 %v54
  %v133 = vpop.f32.mrf.mxu0
  %v134 = vadd.f32 %v37, %v133
  %v135 = vpop.f32.mrf.mxu0
  %136 = vmatprep.mubr.f32.mxu0 0.0
  %137 = vmatmul.mubr.f32.gmra.mxu0 %v57
  %v138 = vpop.f32.mrf.mxu0
  %v139 = vadd.f32 %v42, %v138
  %v140 = vpop.f32.mrf.mxu0
  %141 = vmatprep.mubr.f32.mxu0 0.0
  %142 = vmatmul.mubr.f32.gmra.mxu0 %v60
  %v143 = vpop.f32.mrf.mxu0
  %v144 = vadd.f32 %v47, %v143
  %v145 = vpop.f32.mrf.mxu0
  %146 = vdwg.mxu0
  %v147 = vmax.f32 %v129, 0.0
  %v148 = vmax.f32 %v134, 0.0
  %v149 = vmax.f32 %v139, 0.0
  %v150 = vmax.f32 %v144, 0.0
  %v151 = vld [vmem:[%s3] sm:$0xf]
  %v152 = vld [vmem:[%s4] sm:$0xf]
  %154 = vset.pattern.permute.xlu0 0
  %155 = vperm.xlu0 %154, %v152
  %v156 = vpop.permute.xlu0 %155
  %vm158 = vcmask 261120
  %v160 = vsel %vm158, %v151, 0
  %162 = vmatprep.subr.mxu0 0.0
  %163 = vmatpush1.msra.mxu0 0.0
  %164 = vmatprep.subr.mxu0 0.0
  %165 = vmatpush1.msra.mxu0 0.0
  %166 = vmatprep.subr.mxu0 0.0
  %167 = vmatpush1.msra.mxu0 0.0
  %168 = vmatprep.subr.mxu0 0.0
  %169 = vmatpush1.msra.mxu0 0.0
  %170 = vmatprep.subr.mxu0 0.0
  %171 = vmatpush1.msra.mxu0 0.0
  %172 = vmatprep.subr.mxu0 0.0
  %173 = vmatpush1.msra.mxu0 0.0
  %174 = vmatprep.subr.mxu0 0.0
  %175 = vmatpush1.msra.mxu0 0.0
  %176 = vmatprep.subr.mxu0 0.0
  %177 = vmatpush1.msra.mxu0 0.0
  %178 = vmatprep.subr.mxu0 0.0
  %179 = vmatpush1.msra.mxu0 0.0
  %180 = vmatprep.subr.mxu0 0.0
  %181 = vmatpush1.msra.mxu0 0.0
  %182 = vmatprep.subr.mxu0 0.0
  %183 = vmatpush1.msra.mxu0 0.0
  %184 = vmatprep.subr.mxu0 0.0
  %185 = vmatpush1.msra.mxu0 0.0
  %186 = vmatprep.subr.mxu0 0.0
  %187 = vmatpush1.msra.mxu0 %v150
  %188 = vmatprep.subr.mxu0 0.0
  %189 = vmatpush1.msra.mxu0 %v149
  %190 = vmatprep.subr.mxu0 0.0
  %191 = vmatpush1.msra.mxu0 %v148
  %192 = vmatprep.subr.mxu0 0.0
  %193 = vmatpush1.msra.mxu0 %v147
  %194 = vmatprep.subr.mxu0 0.0
  %195 = vmatpush2.msra.mxu0 0.0
  %196 = vmatprep.subr.mxu0 0.0
  %197 = vmatpush2.msra.mxu0 0.0
  %198 = vmatprep.subr.mxu0 0.0
  %199 = vmatpush2.msra.mxu0 0.0
  %200 = vmatprep.subr.mxu0 0.0
  %201 = vmatpush2.msra.mxu0 0.0
  %202 = vmatprep.subr.mxu0 0.0
  %203 = vmatpush2.msra.mxu0 0.0
  %204 = vmatprep.subr.mxu0 0.0
  %205 = vmatpush2.msra.mxu0 0.0
  %206 = vmatprep.subr.mxu0 0.0
  %207 = vmatpush2.msra.mxu0 0.0
  %208 = vmatprep.subr.mxu0 0.0
  %209 = vmatpush2.msra.mxu0 0.0
  %210 = vmatprep.subr.mxu0 0.0
  %211 = vmatpush2.msra.mxu0 0.0
  %212 = vmatprep.subr.mxu0 0.0
  %213 = vmatpush2.msra.mxu0 0.0
  %214 = vmatprep.subr.mxu0 0.0
  %215 = vmatpush2.msra.mxu0 0.0
  %216 = vmatprep.subr.mxu0 0.0
  %217 = vmatpush2.msra.mxu0 0.0
  %218 = vmatprep.subr.mxu0 0.0
  %219 = vmatpush2.msra.mxu0 0.0
  %220 = vmatprep.subr.mxu0 0.0
  %221 = vmatpush2.msra.mxu0 0.0
  %222 = vmatprep.subr.mxu0 0.0
  %223 = vmatpush2.msra.mxu0 0.0
  %224 = vmatprep.subr.mxu0 0.0
  %225 = vmatpush2.msra.mxu0 0.0
  %226 = vmatprep.mubr.f32.mxu0 0.0
  %227 = vmatmul.mubr.f32.gmra.mxu0 %v160
  %v228 = vpop.f32.mrf.mxu0
  %v229 = vadd.f32 %v156, %v228
  %v230 = vpop.f32.mrf.mxu0
  %231 = vdwg.mxu0
  %vm232 = vcmask 1043456
  %v233 = vsel %vm232, %v229, -inf
  %v234 = vrot.slane %v233, 4
  %v235 = vmax.f32 %v233, %v234
  %v236 = vrot.slane %v235, 2
  %v237 = vmax.f32 %v235, %v236
  %v238 = vrot.slane %v237, 1
  %v239 = vmax.f32 %v237, %v238
  %v240 = vsub.f32 %v229, %v239
  %v241 = vmul.f32 %v240, 1.442695
  %v242 = vpow.pop %v241
  %v243 = vsel %vm232, %v242, 0.0
  %v244 = vrot.slane %v243, 4
  %v245 = vadd.f32 %v243, %v244
  %v246 = vrot.slane %v245, 2
  %v247 = vadd.f32 %v245, %v246
  %v248 = vrot.slane %v247, 1
  %v249 = vadd.f32 %v247, %v248
  %v250 = vrcp.pop %v249
  %v251 = vmul.f32 %v249, %v250
  %v252 = vsub.f32 2.0, %v251
  %v253 = vmul.f32 %v250, %v252
  %v254 = vmul.f32 %v242, %v253
  %255 = vst [vmem:[%s5] sm:$0xf] %v254
  // Predicated region
  $region22: #{policy_forward.1} parent=0 // pred_check
    _
  $region23: #{policy_forward.1} parent=0 // pred_check_branch
    %257 = sbr.rel (0) target = $region25
  $region24: #{policy_forward.1} parent=0 // pred_region
    _
  $region25: #{policy_forward.1} parent=0 // pred_fallthru
    _
  // Predicated region
  $region26: #{policy_forward.1} parent=0 // pred_check
    _
  $region27: #{policy_forward.1} parent=0 // pred_check_branch
    %259 = sbr.rel (0) target = $region29
  $region28: #{policy_forward.1} parent=0 // pred_region
    _
  $region29: #{policy_forward.1} parent=0 // pred_fallthru
    _

</llo_original>
